<compile_context>
chip_gen: v7x
topology: tpu7x:2x2x1
jax: 0.10.0
libtpu: 0.0.40
codegen_flags: <defaults>
</compile_context>

<pallas_src>
import jax
import jax.numpy as jnp
from jax.experimental import pallas as pl
from jax.experimental.pallas import tpu as pltpu


def _decoder_kernel(w1b_ref, x_ref, w2t_ref, o_ref, out1_ref):
    # w1b_ref : (tm, B*I)   rows of block-diagonal W1_big for this M tile
    # x_ref   : (B*I, H)    full fused input (resident across the grid)
    # w2t_ref : (H, tv)     column tile of W2^T
    # o_ref   : (tm, tv)    lane-dense output tile
    # out1_ref: (tm, H)     VMEM scratch, first-GEMM result for this M tile
    v = pl.program_id(1)

    # First GEMM once per M tile (reused across all V tiles).
    @pl.when(v == 0)
    def _():
        out1_ref[...] = jnp.dot(
            w1b_ref[...], x_ref[...], preferred_element_type=jnp.float32
        )

    # Second (dominant) GEMM: (tm, H) @ (H, tv) -> (tm, tv).
    o_ref[...] = jnp.dot(
        out1_ref[...], w2t_ref[...], preferred_element_type=jnp.float32
    ).astype(o_ref.dtype)


def _pick_tile(dim, candidates):
    for c in candidates:
        if dim >= c and dim % c == 0:
            return c
    return dim


def decoder_forward(ctx_vec, w1, w2):
    B, I, H = ctx_vec.shape
    T, I2 = w1.shape
    V, H2 = w2.shape
    assert I == I2 and H == H2

    # --- wrapper-side layout plumbing (all free or negligible) ---------------
    x_flat = ctx_vec.reshape(B * I, H)                       # (B*I, H)
    w1_big = jnp.kron(jnp.eye(B, dtype=w1.dtype), w1)        # (B*T, B*I) block-diag
    w2t = w2.T                                               # (H, V) lane-dense

    M = B * T
    # Tile sizes: full dims at toy scale; 128/256-aligned tiles when large.
    # (On v7x, budget W2^T tiles against 64 MiB VMEM — these choices stay small.)
    tm = M if M <= 256 else _pick_tile(M, (256, 128))
    tv = V if V <= 512 else _pick_tile(V, (512, 256, 128))
    n_m = M // tm
    n_v = V // tv

    out_flat = pl.pallas_call(
        _decoder_kernel,
        out_shape=jax.ShapeDtypeStruct((M, V), ctx_vec.dtype),
        grid_spec=pltpu.PrefetchScalarGridSpec(
            num_scalar_prefetch=0,
            grid=(n_m, n_v),
            in_specs=[
                pl.BlockSpec((tm, B * I), lambda m, v: (m, 0)),  # W1_big rows
                pl.BlockSpec((B * I, H), lambda m, v: (0, 0)),   # full x (resident)
                pl.BlockSpec((H, tv), lambda m, v: (0, v)),      # W2^T column tile
            ],
            out_specs=pl.BlockSpec((tm, tv), lambda m, v: (m, v)),
            scratch_shapes=[pltpu.VMEM((tm, H), jnp.float32)],
        ),
        compiler_params=pltpu.CompilerParams(
            dimension_semantics=("parallel", "arbitrary"),
        ),
    )(w1_big, x_flat, w2t)

    return out_flat.reshape(B, T, V)


def _xavier_normal(key, shape):
    # torch.nn.init.xavier_normal_: std = gain * sqrt(2 / (fan_in + fan_out))
    fan_out, fan_in = shape
    std = (2.0 / (fan_in + fan_out)) ** 0.5
    return std * jax.random.normal(key, shape, dtype=jnp.float32)


if __name__ == "__main__":
    # Small shapes consistent with the module's forward.
    B, I, T, H, V = 2, 16, 8, 32, 128   # batch, input_seq_len, target_seq_len, hidden, vocab

    key = jax.random.PRNGKey(0)
    k_x, k_w1, k_w2 = jax.random.split(key, 3)

    ctx_vec = jax.random.normal(k_x, (B, I, H), dtype=jnp.float32)
    w1 = _xavier_normal(k_w1, (T, I))   # first_decoder.weight  (target_seq_len, input_seq_len)
    w2 = _xavier_normal(k_w2, (V, H))   # second_decoder.weight (vocab_size, hidden_size)
    # Biases and ReLU exist in the module but are unused in forward; omitted.

    out = jax.block_until_ready(decoder_forward(ctx_vec, w1, w2))

    # Reference check in plain JAX (same einsum semantics as PyTorch).
    ref = jnp.einsum('bih,ti->bth', ctx_vec, w1)
    ref = jnp.einsum('bth,vh->btv', ref, w2)
    assert out.shape == (B, T, V)
    assert jnp.allclose(out, ref, atol=1e-4, rtol=1e-4)

    print("KERNEL_OK")
</pallas_src>

<mosaic_0001>
module attributes {stable_mosaic.version = 11 : i64} {
  func.func @_decoder_kernel(%arg0: i32, %arg1: i32, %arg2: memref<16x32xf32, #tpu.memory_space<vmem>>, %arg3: memref<32x32xf32, #tpu.memory_space<vmem>>, %arg4: memref<32x128xf32, #tpu.memory_space<vmem>>, %arg5: memref<16x128xf32, #tpu.memory_space<vmem>>, %arg6: memref<16x32xf32, #tpu.memory_space<vmem>>) attributes {dimension_semantics = [#tpu.dimension_semantics<parallel>, #tpu.dimension_semantics<arbitrary>], iteration_bounds = array<i64: 1, 1>, scalar_prefetch = 0 : i64, scratch_operands = 1 : i64, tpu.core_type = #tpu.core_type<tc>, window_params = [{transform_indices = @transform_0, window_bounds = array<i64: 16, 32>}, {pipeline_mode = #tpu.pipeline_mode<synchronous>, transform_indices = @transform_1, window_bounds = array<i64: 32, 32>}, {transform_indices = @transform_2, window_bounds = array<i64: 32, 128>}, {transform_indices = @transform_3, window_bounds = array<i64: 16, 128>}]} {
    %c0_i32 = arith.constant 0 : i32
    %0 = arith.cmpi eq, %arg1, %c0_i32 : i32
    %1 = arith.extui %0 : i1 to i32
    %c0_i32_0 = arith.constant 0 : i32
    %2 = arith.cmpi ne, %1, %c0_i32_0 : i32
    scf.if %2 {
      %c0_6 = arith.constant 0 : index
      %c0_7 = arith.constant 0 : index
      %7 = vector.load %arg2[%c0_6, %c0_7] : memref<16x32xf32, #tpu.memory_space<vmem>>, vector<16x32xf32>
      %c0_8 = arith.constant 0 : index
      %c0_9 = arith.constant 0 : index
      %8 = vector.load %arg3[%c0_8, %c0_9] : memref<32x32xf32, #tpu.memory_space<vmem>>, vector<32x32xf32>
      %cst_10 = arith.constant dense<0.000000e+00> : vector<16x32xf32>
      %9 = tpu.matmul %7, %8, %cst_10 {dimension_numbers = #tpu.dot_dimension_numbers<[1], [0], [0], [1], [0, 0, 1, 1], [], []>} : vector<16x32xf32>, vector<32x32xf32>, vector<16x32xf32> -> vector<16x32xf32>
      %c0_11 = arith.constant 0 : index
      %c0_12 = arith.constant 0 : index
      %10 = vector.load %arg6[%c0_11, %c0_12] : memref<16x32xf32, #tpu.memory_space<vmem>>, vector<16x32xf32>
      tpu.vector_store %arg6[%c0_11, %c0_12], %9 {strides = array<i32>} : memref<16x32xf32, #tpu.memory_space<vmem>>, vector<16x32xf32>,
    } else {
    }
    %c0 = arith.constant 0 : index
    %c0_1 = arith.constant 0 : index
    %3 = vector.load %arg6[%c0, %c0_1] : memref<16x32xf32, #tpu.memory_space<vmem>>, vector<16x32xf32>
    %c0_2 = arith.constant 0 : index
    %c0_3 = arith.constant 0 : index
    %4 = vector.load %arg4[%c0_2, %c0_3] : memref<32x128xf32, #tpu.memory_space<vmem>>, vector<32x128xf32>
    %cst = arith.constant dense<0.000000e+00> : vector<16x128xf32>
    %5 = tpu.matmul %3, %4, %cst {dimension_numbers = #tpu.dot_dimension_numbers<[1], [0], [0], [1], [0, 0, 1, 1], [], []>} : vector<16x32xf32>, vector<32x128xf32>, vector<16x128xf32> -> vector<16x128xf32>
    %c0_4 = arith.constant 0 : index
    %c0_5 = arith.constant 0 : index
    %6 = vector.load %arg5[%c0_4, %c0_5] : memref<16x128xf32, #tpu.memory_space<vmem>>, vector<16x128xf32>
    tpu.vector_store %arg5[%c0_4, %c0_5], %5 {strides = array<i32>} : memref<16x128xf32, #tpu.memory_space<vmem>>, vector<16x128xf32>,
    return
  }
  func.func @transform_0(%arg0: i32, %arg1: i32) -> (i32, i32) {
    %c0_i32 = arith.constant 0 : i32
    %c0_i32_0 = arith.constant 0 : i32
    return %arg0, %c0_i32 : i32, i32
  }
  func.func @transform_1(%arg0: i32, %arg1: i32) -> (i32, i32) {
    %c0_i32 = arith.constant 0 : i32
    %c0_i32_0 = arith.constant 0 : i32
    %c0_i32_1 = arith.constant 0 : i32
    return %c0_i32, %c0_i32_0 : i32, i32
  }
  func.func @transform_2(%arg0: i32, %arg1: i32) -> (i32, i32) {
    %c0_i32 = arith.constant 0 : i32
    %c0_i32_0 = arith.constant 0 : i32
    return %c0_i32, %arg1 : i32, i32
  }
  func.func @transform_3(%arg0: i32, %arg1: i32) -> (i32, i32) {
    %c0_i32 = arith.constant 0 : i32
    return %arg0, %arg1 : i32, i32
  }
}

</mosaic_0001>

<llo_original>
// kernel: tpu_custom_call.1
$region0: #{tpu_custom_call.1}
  #allocation0 [shape = 'u32[]', space=smem, size = 0x4, offset = 0x4, fixed_abs, tag = 'smem constant byte address 0x4 - core index']
  #allocation1 [shape = 'u32[144,128]{1,0:T(1,128)}', space=vmem, size = 0x12000, scoped, tag = 'internal scratch']
  #allocation2 [shape = 'f32[16,32]{1,0:T(8,128)}', space=vmem, size = 0x2000, scoped, tag = 'scratch operand']
  %s0 = inlined_call_operand.hbm [shape: f32[16,32], index: 0, kind: input, shape index: {}]
  %s1 = inlined_call_operand.hbm [shape: f32[32,32], index: 1, kind: input, shape index: {}]
  %s2 = inlined_call_operand.hbm [shape: f32[32,128], index: 2, kind: input, shape index: {}]
  %s3 = inlined_call_operand.hbm [shape: f32[16,128], index: 3, kind: output, shape index: {}]
  %s4 = sld [smem:[#allocation0]]
  $region38: #{tpu_custom_call.1} parent=0
    _
  %s6 = ssub.s32 1, %s4
  %s7 = scalar_select 0, %s6, %s4
  $region1: #{tpu_custom_call.1} parent=0
    #allocation3 [shape = 'u8[8192]{0}', space=vmem, size = 0x2000, scoped, tag = 'input window, operand 0, single buffered']
    #allocation4 [shape = 's32[1]{0}', space=sflag, size = 0x4, scoped, tag = 'scoped memory for tpu_custom_call.1']
    #allocation5 [shape = 's32[1]{0}', space=sflag, size = 0x4, scoped, tag = 'scoped memory for tpu_custom_call.1']
    #allocation6 [shape = 'u8[16384]{0}', space=vmem, size = 0x4000, scoped, tag = 'input window, operand 1, single buffered']
    #allocation7 [shape = 's32[1]{0}', space=sflag, size = 0x4, scoped, tag = 'scoped memory for tpu_custom_call.1']
    #allocation8 [shape = 'u8[16384]{0}', space=vmem, size = 0x4000, scoped, tag = 'input window, operand 2, single buffered']
    #allocation9 [shape = 'u8[8192]{0}', space=vmem, size = 0x2000, scoped, tag = 'output window, operand 0, single buffered']
    %8 = vsyncpa [#allocation4], 0
    %9 = vsyncpa [#allocation7], 0
    %10 = vsyncpa [#allocation5], 0
    // Predicated region
    $region2: #{tpu_custom_call.1} parent=1 // pred_check
      _
    $region3: #{tpu_custom_call.1} parent=1 // pred_check_branch
      %12 = sbr.rel (0) target = $region5
    $region4: #{tpu_custom_call.1} parent=1 // pred_region
      %s14 = ssub.s32 256, 256
      %15 = vsyncadd [#allocation4], %s14
      %s16 = sshll.u32 [#allocation3], 4
      %s17 = int_to_ptr.vmem [resolvable:$true] %s16
      %22 = dma.hbm_to_vmem [thread:$0]  %s0, 256, %s17, [#allocation4], 128, 128, 8
    $region5: #{tpu_custom_call.1} parent=1 // pred_fallthru
      _
    // Predicated region
    $region6: #{tpu_custom_call.1} parent=1 // pred_check
      _
    $region7: #{tpu_custom_call.1} parent=1 // pred_check_branch
      %24 = sbr.rel (0) target = $region9
    $region8: #{tpu_custom_call.1} parent=1 // pred_region
      %s26 = ssub.s32 512, 512
      %27 = vsyncadd [#allocation7], %s26
      %s28 = sshll.u32 [#allocation6], 4
      %s29 = int_to_ptr.vmem [resolvable:$true] %s28
      %34 = dma.hbm_to_vmem [thread:$0]  %s1, 512, %s29, [#allocation7], 128, 128, 8
    $region9: #{tpu_custom_call.1} parent=1 // pred_fallthru
      _
    // Predicated region
    $region10: #{tpu_custom_call.1} parent=1 // pred_check
      _
    $region11: #{tpu_custom_call.1} parent=1 // pred_check_branch
      %36 = sbr.rel (0) target = $region13
    $region12: #{tpu_custom_call.1} parent=1 // pred_region
      %s38 = ssub.s32 512, 512
      %39 = vsyncadd [#allocation7], %s38
      %s40 = sshll.u32 [#allocation8], 4
      %s41 = int_to_ptr.vmem [resolvable:$true] %s40
      %46 = dma.hbm_to_vmem [thread:$0]  %s2, 512, %s41, [#allocation7], 128, 128, 8
    $region13: #{tpu_custom_call.1} parent=1 // pred_fallthru
      _
    // Predicated region
    $region14: #{tpu_custom_call.1} parent=1 // pred_check
      _
    $region15: #{tpu_custom_call.1} parent=1 // pred_check_branch
      %48 = sbr.rel (0) target = $region17
    $region16: #{tpu_custom_call.1} parent=1 // pred_region
      %49 = dma.done [#allocation4], 256
    $region17: #{tpu_custom_call.1} parent=1 // pred_fallthru
      _
    // Predicated region
    $region18: #{tpu_custom_call.1} parent=1 // pred_check
      _
    $region19: #{tpu_custom_call.1} parent=1 // pred_check_branch
      %51 = sbr.rel (0) target = $region21
    $region20: #{tpu_custom_call.1} parent=1 // pred_region
      %52 = dma.done [#allocation7], 512
    $region21: #{tpu_custom_call.1} parent=1 // pred_fallthru
      _
    // Predicated region
    $region22: #{tpu_custom_call.1} parent=1 // pred_check
      _
    $region23: #{tpu_custom_call.1} parent=1 // pred_check_branch
      %54 = sbr.rel (0) target = $region25
    $region24: #{tpu_custom_call.1} parent=1 // pred_region
      %55 = dma.done [#allocation7], 512
    $region25: #{tpu_custom_call.1} parent=1 // pred_fallthru
      _
    %p56 = scmp.eq.s32.totalorder 0, 0
    // Predicated region
    $region26: #{tpu_custom_call.1} parent=1 // pred_check
      %p57 = pneg %p56
    $region27: #{tpu_custom_call.1} parent=1 // pred_check_branch
      %59 = sbr.rel (%p57) target = $region29
    $region28: #{tpu_custom_call.1} parent=1 // pred_region
      %v60 = vld [vmem:[#allocation3] sm:$0xff]
      %v61 = vld [vmem:[#allocation3 + $0x8] sm:$0xff]
      %v62 = vld [vmem:[#allocation6] sm:$0xff]
      %v63 = vld [vmem:[#allocation6 + $0x8] sm:$0xff]
      %v64 = vld [vmem:[#allocation6 + $0x10] sm:$0xff]
      %v65 = vld [vmem:[#allocation6 + $0x18] sm:$0xff]
      %vm66 = vcmask 261120
      %v68 = vsel %vm66, %v60, 0
      %v71 = vsel %vm66, %v61, 0
      %73 = vmatprep.subr.mxu0 0.0
      %74 = vmatpush1.msra.mxu0 %v62
      %75 = vmatprep.subr.mxu0 0.0
      %76 = vmatpush1.msra.mxu0 %v63
      %77 = vmatprep.subr.mxu0 0.0
      %78 = vmatpush1.msra.mxu0 %v64
      %79 = vmatprep.subr.mxu0 0.0
      %80 = vmatpush1.msra.mxu0 %v65
      %81 = vmatprep.subr.mxu0 0.0
      %82 = vmatpush1.msra.mxu0 0.0
      %83 = vmatprep.subr.mxu0 0.0
      %84 = vmatpush1.msra.mxu0 0.0
      %85 = vmatprep.subr.mxu0 0.0
      %86 = vmatpush1.msra.mxu0 0.0
      %87 = vmatprep.subr.mxu0 0.0
      %88 = vmatpush1.msra.mxu0 0.0
      %89 = vmatprep.subr.mxu0 0.0
      %90 = vmatpush1.msra.mxu0 0.0
      %91 = vmatprep.subr.mxu0 0.0
      %92 = vmatpush1.msra.mxu0 0.0
      %93 = vmatprep.subr.mxu0 0.0
      %94 = vmatpush1.msra.mxu0 0.0
      %95 = vmatprep.subr.mxu0 0.0
      %96 = vmatpush1.msra.mxu0 0.0
      %97 = vmatprep.subr.mxu0 0.0
      %98 = vmatpush1.msra.mxu0 0.0
      %99 = vmatprep.subr.mxu0 0.0
      %100 = vmatpush1.msra.mxu0 0.0
      %101 = vmatprep.subr.mxu0 0.0
      %102 = vmatpush1.msra.mxu0 0.0
      %103 = vmatprep.subr.mxu0 0.0
      %104 = vmatpush1.msra.mxu0 0.0
      %105 = vmatprep.subr.mxu0 0.0
      %106 = vmatpush1.msra.mxu0 0.0
      %107 = vmatprep.subr.mxu0 0.0
      %108 = vmatpush1.msra.mxu0 0.0
      %109 = vmatprep.subr.mxu0 0.0
      %110 = vmatpush1.msra.mxu0 0.0
      %111 = vmatprep.subr.mxu0 0.0
      %112 = vmatpush1.msra.mxu0 0.0
      %113 = vmatprep.subr.mxu0 0.0
      %114 = vmatpush1.msra.mxu0 0.0
      %115 = vmatprep.subr.mxu0 0.0
      %116 = vmatpush1.msra.mxu0 0.0
      %117 = vmatprep.subr.mxu0 0.0
      %118 = vmatpush1.msra.mxu0 0.0
      %119 = vmatprep.subr.mxu0 0.0
      %120 = vmatpush1.msra.mxu0 0.0
      %121 = vmatprep.subr.mxu0 0.0
      %122 = vmatpush1.msra.mxu0 0.0
      %123 = vmatprep.subr.mxu0 0.0
      %124 = vmatpush1.msra.mxu0 0.0
      %125 = vmatprep.subr.mxu0 0.0
      %126 = vmatpush1.msra.mxu0 0.0
      %127 = vmatprep.subr.mxu0 0.0
      %128 = vmatpush1.msra.mxu0 0.0
      %129 = vmatprep.subr.mxu0 0.0
      %130 = vmatpush1.msra.mxu0 0.0
      %131 = vmatprep.subr.mxu0 0.0
      %132 = vmatpush1.msra.mxu0 0.0
      %133 = vmatprep.subr.mxu0 0.0
      %134 = vmatpush1.msra.mxu0 0.0
      %135 = vmatprep.subr.mxu0 0.0
      %136 = vmatpush1.msra.mxu0 0.0
      %137 = vmatprep.mubr.f32.mxu0 0.0
      %138 = vmatmul.mubr.f32.gmra.mrb[0].mxu0 %v68
      %v139 = vpop.f32.mrb[0].mxu0
      %v140 = vadd.f32 0.0, %v139
      %v141 = vpop.f32.mrb[0].mxu0
      %142 = vmatprep.mubr.f32.mxu0 0.0
      %143 = vmatmul.mubr.f32.gmra.mrb[0].mxu0 %v71
      %v144 = vpop.f32.mrb[0].mxu0
      %v145 = vadd.f32 0.0, %v144
      %v146 = vpop.f32.mrb[0].mxu0
      %147 = vdwg.mxu0
      %148 = vst.msk [vmem:[#allocation2] sm:$0xff] %vm66, %v140
      %149 = vst.msk [vmem:[#allocation2 + $0x8] sm:$0xff] %vm66, %v145
    $region29: #{tpu_custom_call.1} parent=1 // pred_fallthru
      _
    %v150 = vld [vmem:[#allocation2] sm:$0xff]
    %v151 = vld [vmem:[#allocation2 + $0x8] sm:$0xff]
    %v152 = vld [vmem:[#allocation8] sm:$0xff]
    %v153 = vld [vmem:[#allocation8 + $0x8] sm:$0xff]
    %v154 = vld [vmem:[#allocation8 + $0x10] sm:$0xff]
    %v155 = vld [vmem:[#allocation8 + $0x18] sm:$0xff]
    %vm156 = vcmask 261120
    %v158 = vsel %vm156, %v150, 0
    %v161 = vsel %vm156, %v151, 0
    %163 = vmatprep.subr.mxu0 0.0
    %164 = vmatpush1.msra.mxu0 %v152
    %165 = vmatprep.subr.mxu0 0.0
    %166 = vmatpush1.msra.mxu0 %v153
    %167 = vmatprep.subr.mxu0 0.0
    %168 = vmatpush1.msra.mxu0 %v154
    %169 = vmatprep.subr.mxu0 0.0
    %170 = vmatpush1.msra.mxu0 %v155
    %171 = vmatprep.subr.mxu0 0.0
    %172 = vmatpush1.msra.mxu0 0.0
    %173 = vmatprep.subr.mxu0 0.0
    %174 = vmatpush1.msra.mxu0 0.0
    %175 = vmatprep.subr.mxu0 0.0
    %176 = vmatpush1.msra.mxu0 0.0
    %177 = vmatprep.subr.mxu0 0.0
    %178 = vmatpush1.msra.mxu0 0.0
    %179 = vmatprep.subr.mxu0 0.0
    %180 = vmatpush1.msra.mxu0 0.0
    %181 = vmatprep.subr.mxu0 0.0
    %182 = vmatpush1.msra.mxu0 0.0
    %183 = vmatprep.subr.mxu0 0.0
    %184 = vmatpush1.msra.mxu0 0.0
    %185 = vmatprep.subr.mxu0 0.0
    %186 = vmatpush1.msra.mxu0 0.0
    %187 = vmatprep.subr.mxu0 0.0
    %188 = vmatpush1.msra.mxu0 0.0
    %189 = vmatprep.subr.mxu0 0.0
    %190 = vmatpush1.msra.mxu0 0.0
    %191 = vmatprep.subr.mxu0 0.0
    %192 = vmatpush1.msra.mxu0 0.0
    %193 = vmatprep.subr.mxu0 0.0
    %194 = vmatpush1.msra.mxu0 0.0
    %195 = vmatprep.subr.mxu0 0.0
    %196 = vmatpush1.msra.mxu0 0.0
    %197 = vmatprep.subr.mxu0 0.0
    %198 = vmatpush1.msra.mxu0 0.0
    %199 = vmatprep.subr.mxu0 0.0
    %200 = vmatpush1.msra.mxu0 0.0
    %201 = vmatprep.subr.mxu0 0.0
    %202 = vmatpush1.msra.mxu0 0.0
    %203 = vmatprep.subr.mxu0 0.0
    %204 = vmatpush1.msra.mxu0 0.0
    %205 = vmatprep.subr.mxu0 0.0
    %206 = vmatpush1.msra.mxu0 0.0
    %207 = vmatprep.subr.mxu0 0.0
    %208 = vmatpush1.msra.mxu0 0.0
    %209 = vmatprep.subr.mxu0 0.0
    %210 = vmatpush1.msra.mxu0 0.0
    %211 = vmatprep.subr.mxu0 0.0
    %212 = vmatpush1.msra.mxu0 0.0
    %213 = vmatprep.subr.mxu0 0.0
    %214 = vmatpush1.msra.mxu0 0.0
    %215 = vmatprep.subr.mxu0 0.0
    %216 = vmatpush1.msra.mxu0 0.0
    %217 = vmatprep.subr.mxu0 0.0
    %218 = vmatpush1.msra.mxu0 0.0
    %219 = vmatprep.subr.mxu0 0.0
    %220 = vmatpush1.msra.mxu0 0.0
    %221 = vmatprep.subr.mxu0 0.0
    %222 = vmatpush1.msra.mxu0 0.0
    %223 = vmatprep.subr.mxu0 0.0
    %224 = vmatpush1.msra.mxu0 0.0
    %225 = vmatprep.subr.mxu0 0.0
    %226 = vmatpush1.msra.mxu0 0.0
    %227 = vmatprep.mubr.f32.mxu0 0.0
    %228 = vmatmul.mubr.f32.gmra.mrb[0].mxu0 %v158
    %v229 = vpop.f32.mrb[0].mxu0
    %v230 = vadd.f32 0.0, %v229
    %v231 = vpop.f32.mrb[0].mxu0
    %232 = vmatprep.mubr.f32.mxu0 0.0
    %233 = vmatmul.mubr.f32.gmra.mrb[0].mxu0 %v161
    %v234 = vpop.f32.mrb[0].mxu0
    %v235 = vadd.f32 0.0, %v234
    %v236 = vpop.f32.mrb[0].mxu0
    %237 = vdwg.mxu0
    %238 = vst [vmem:[#allocation9] sm:$0xff] %v230
    %239 = vst [vmem:[#allocation9 + $0x8] sm:$0xff] %v235
    // Predicated region
    $region30: #{tpu_custom_call.1} parent=1 // pred_check
      _
    $region31: #{tpu_custom_call.1} parent=1 // pred_check_branch
      %241 = sbr.rel (0) target = $region33
    $region32: #{tpu_custom_call.1} parent=1 // pred_region
      %s243 = ssub.s32 256, 256
      %244 = vsyncadd [#allocation5], %s243
      %s245 = sshll.u32 [#allocation9], 4
      %s246 = int_to_ptr.vmem [resolvable:$true] %s245
      %251 = dma.vmem_to_hbm [thread:$0]  %s246, 256, %s3, [#allocation5], 128, 128, 8
    $region33: #{tpu_custom_call.1} parent=1 // pred_fallthru
      _
    // Predicated region
    $region34: #{tpu_custom_call.1} parent=1 // pred_check
      _
    $region35: #{tpu_custom_call.1} parent=1 // pred_check_branch
      %253 = sbr.rel (0) target = $region37
    $region36: #{tpu_custom_call.1} parent=1 // pred_region
      %254 = dma.done [#allocation5], 256
    $region37: #{tpu_custom_call.1} parent=1 // pred_fallthru
      _
    %255 = vsyncpa [#allocation4], 1
    %256 = vsyncpa [#allocation7], 1
    %257 = vsyncpa [#allocation5], 1

</llo_original>
